<compile_context>
chip_gen: v7x
topology: tpu7x:2x2x1
jax: 0.10.0
libtpu: 0.0.40
codegen_flags: <defaults>
</compile_context>

<pallas_src>
import jax
import jax.numpy as jnp
from jax.experimental import pallas as pl
from jax.experimental.pallas import tpu as pltpu


def attention_decoder_kernel(
    # inputs
    h0_ref, c0_ref, enc_ref, enc_t_ref, inp_ref,
    w_attn_e_ref, w_gates_ref, b_lstm_ref, w_final_ref, b_final_ref,
    # outputs
    vec_out_ref, attn_w_ref,
    # scratch
    x_ref,
):
    O = h0_ref.shape[1]
    V = inp_ref.shape[1]
    H = enc_ref.shape[1]

    h0 = h0_ref[...]        # (1, O)
    c0 = c0_ref[...]        # (1, O)
    inp = inp_ref[...]      # (1, V)

    # ---- attention scores, lane-dense (1, S) ------------------------------
    # The h-dependent term and the bias are constant across the sequence axis,
    # so softmax(score_e + score_h + b) == softmax(score_e): drop them.
    scores = jnp.dot(w_attn_e_ref[...], enc_t_ref[...],
                     preferred_element_type=jnp.float32)            # (1, S)
    m = jnp.max(scores, axis=-1, keepdims=True)
    ex = jnp.exp(scores - m)
    w_row = ex / jnp.sum(ex, axis=-1, keepdims=True)                # (1, S)
    attn_w_ref[...] = w_row

    # attn_applied = w_row @ enc -> (1, H)  (MXU)
    attn = jnp.dot(w_row, enc_ref[...], preferred_element_type=jnp.float32)

    # ---- fused single-timestep LSTM (PyTorch gate order: i, f, g, o) ------
    # Build the fused input row [attn | token | h0] in VMEM scratch, one matmul.
    x_ref[:, 0:H] = attn
    x_ref[:, H:H + V] = inp
    x_ref[:, H + V:H + V + O] = h0

    gates = (
        jnp.dot(x_ref[...], w_gates_ref[...], preferred_element_type=jnp.float32)
        + b_lstm_ref[...]
    )                                                               # (1, 4*O)

    # full-vreg transcendentals, then slice the gate quarters
    sig = jax.nn.sigmoid(gates)
    th = jnp.tanh(gates)
    i_g = sig[:, 0 * O:1 * O]
    f_g = sig[:, 1 * O:2 * O]
    g_g = th[:, 2 * O:3 * O]
    o_g = sig[:, 3 * O:4 * O]

    c_new = f_g * c0 + i_g * g_g
    h_new = o_g * jnp.tanh(c_new)

    # ---- final projection: Linear(O -> V) ---------------------------------
    out = (
        jnp.dot(h_new, w_final_ref[...], preferred_element_type=jnp.float32)
        + b_final_ref[...]
    )

    # pack the three small vectors into one lane-dense slab [out | h' | c']
    vec_out_ref[:, 0:V] = out
    vec_out_ref[:, V:V + O] = h_new
    vec_out_ref[:, V + O:V + 2 * O] = c_new


def attention_decoder_forward(params, decoder_hidden, encoder_outputs, inp):
    """Mirrors AttentionDecoder.forward.

    decoder_hidden : (h, c), each (1, 1, O)
    encoder_outputs: (S, 1, H)
    inp            : (1, 1, V)
    returns (output (1, V), (h' (1,1,O), c' (1,1,O)), normalized_weights (1, S))
    """
    h0, c0 = decoder_hidden
    S, _, H = encoder_outputs.shape
    O = h0.shape[-1]
    V = inp.shape[-1]

    # ---- plain-JAX glue: reshape / split / stack / transpose params ----
    h0_2d = h0.reshape(1, O).astype(jnp.float32)
    c0_2d = c0.reshape(1, O).astype(jnp.float32)
    enc_2d = encoder_outputs.reshape(S, H).astype(jnp.float32)
    enc_t = enc_2d.T                                   # (H, S)
    inp_2d = inp.reshape(1, V).astype(jnp.float32)

    # attention Linear(O+H -> 1); cat order is [h, enc] -> only the enc columns
    # matter for the softmax (shift invariance), so only pass those.
    w_attn_e = params["attn_w"][:, O:]                 # (1, H)

    # fused LSTM weight: rows = [attn (H) | token (V) | h (O)], cols = 4O gates
    w_gates = jnp.concatenate(
        [params["lstm_w_ih"].T, params["lstm_w_hh"].T], axis=0)   # (H+V+O, 4O)
    b_lstm = (params["lstm_b_ih"] + params["lstm_b_hh"]).reshape(1, 4 * O)

    w_final_t = params["final_w"].T                    # (O, V)
    b_final = params["final_b"].reshape(1, V)

    args = (
        h0_2d, c0_2d, enc_2d, enc_t, inp_2d,
        w_attn_e, w_gates, b_lstm, w_final_t, b_final,
    )

    def full_spec(a):
        n = a.ndim
        return pl.BlockSpec(a.shape, lambda i, _n=n: (0,) * _n)

    vec_out, attn_w = pl.pallas_call(
        attention_decoder_kernel,
        grid=(1,),
        in_specs=[full_spec(a) for a in args],
        out_specs=(
            pl.BlockSpec((1, V + 2 * O), lambda i: (0, 0)),
            pl.BlockSpec((1, S), lambda i: (0, 0)),
        ),
        out_shape=(
            jax.ShapeDtypeStruct((1, V + 2 * O), jnp.float32),
            jax.ShapeDtypeStruct((1, S), jnp.float32),
        ),
        scratch_shapes=[pltpu.VMEM((1, H + V + O), jnp.float32)],
        compiler_params=pltpu.CompilerParams(
            dimension_semantics=("arbitrary",)),
    )(*args)

    out = vec_out[:, :V]
    hidden = (vec_out[:, V:V + O].reshape(1, 1, O),
              vec_out[:, V + O:V + 2 * O].reshape(1, 1, O))
    normalized_weights = attn_w                       # already (1, S), no reshape needed
    return out, hidden, normalized_weights


def reference_forward(params, decoder_hidden, encoder_outputs, inp):
    """Pure-JAX re-statement of the PyTorch forward, for checking."""
    h0, c0 = decoder_hidden
    S, _, H = encoder_outputs.shape
    O = h0.shape[-1]
    V = inp.shape[-1]
    h0v = h0.reshape(1, O)
    c0v = c0.reshape(1, O)
    enc = encoder_outputs.reshape(S, H)

    cat = jnp.concatenate([jnp.broadcast_to(h0v, (S, O)), enc], axis=1)   # (S, O+H)
    scores = cat @ params["attn_w"].T + params["attn_b"]                  # (S, 1)
    w = jax.nn.softmax(scores[:, 0])                                      # (S,)
    attn = w[None, :] @ enc                                               # (1, H)

    x = jnp.concatenate([attn, inp.reshape(1, V)], axis=1)                # (1, H+V)
    gates = (x @ params["lstm_w_ih"].T + params["lstm_b_ih"]
             + h0v @ params["lstm_w_hh"].T + params["lstm_b_hh"])
    i_g = jax.nn.sigmoid(gates[:, :O])
    f_g = jax.nn.sigmoid(gates[:, O:2 * O])
    g_g = jnp.tanh(gates[:, 2 * O:3 * O])
    o_g = jax.nn.sigmoid(gates[:, 3 * O:])
    c_new = f_g * c0v + i_g * g_g
    h_new = o_g * jnp.tanh(c_new)
    out = h_new @ params["final_w"].T + params["final_b"]
    return out, (h_new.reshape(1, 1, O), c_new.reshape(1, 1, O)), w.reshape(1, S)


if __name__ == "__main__":
    # module sizes
    HIDDEN = 32   # hidden_size (encoder feature dim)
    OUTPUT = 32   # output_size (LSTM hidden dim)
    VOCAB = 32    # vocab_size
    SEQ = 8       # encoder sequence length

    key = jax.random.PRNGKey(0)
    keys = jax.random.split(key, 12)

    # deterministic synthetic parameters (shapes follow nn.Linear / nn.LSTM)
    params = {
        "attn_w":    0.1 * jax.random.normal(keys[0], (1, HIDDEN + OUTPUT), jnp.float32),
        "attn_b":    0.1 * jax.random.normal(keys[1], (1,), jnp.float32),
        "lstm_w_ih": 0.1 * jax.random.normal(keys[2], (4 * OUTPUT, HIDDEN + VOCAB), jnp.float32),
        "lstm_w_hh": 0.1 * jax.random.normal(keys[3], (4 * OUTPUT, OUTPUT), jnp.float32),
        "lstm_b_ih": 0.1 * jax.random.normal(keys[4], (4 * OUTPUT,), jnp.float32),
        "lstm_b_hh": 0.1 * jax.random.normal(keys[5], (4 * OUTPUT,), jnp.float32),
        "final_w":   0.1 * jax.random.normal(keys[6], (VOCAB, OUTPUT), jnp.float32),
        "final_b":   0.1 * jax.random.normal(keys[7], (VOCAB,), jnp.float32),
    }

    # deterministic inputs (same conventions as the PyTorch forward)
    decoder_hidden = (
        jax.random.normal(keys[8], (1, 1, OUTPUT), jnp.float32),
        jax.random.normal(keys[9], (1, 1, OUTPUT), jnp.float32),
    )
    encoder_outputs = jax.random.normal(keys[10], (SEQ, 1, HIDDEN), jnp.float32)
    token_input = jax.random.normal(keys[11], (1, 1, VOCAB), jnp.float32)

    out, hidden, attn_w = attention_decoder_forward(
        params, decoder_hidden, encoder_outputs, token_input)
    jax.block_until_ready((out, hidden, attn_w))

    ref_out, ref_hidden, ref_w = reference_forward(
        params, decoder_hidden, encoder_outputs, token_input)

    assert out.shape == (1, VOCAB)
    assert hidden[0].shape == (1, 1, OUTPUT) and hidden[1].shape == (1, 1, OUTPUT)
    assert attn_w.shape == (1, SEQ)
    assert jnp.allclose(out, ref_out, atol=1e-4, rtol=1e-4)
    assert jnp.allclose(hidden[0], ref_hidden[0], atol=1e-4, rtol=1e-4)
    assert jnp.allclose(hidden[1], ref_hidden[1], atol=1e-4, rtol=1e-4)
    assert jnp.allclose(attn_w, ref_w, atol=1e-5, rtol=1e-5)

    print("KERNEL_OK")
</pallas_src>

<mosaic_0001>
module attributes {stable_mosaic.version = 11 : i64} {
  func.func @attention_decoder_kernel(%arg0: i32, %arg1: memref<1x32xf32, #tpu.memory_space<vmem>>, %arg2: memref<1x32xf32, #tpu.memory_space<vmem>>, %arg3: memref<8x32xf32, #tpu.memory_space<vmem>>, %arg4: memref<32x8xf32, #tpu.memory_space<vmem>>, %arg5: memref<1x32xf32, #tpu.memory_space<vmem>>, %arg6: memref<1x32xf32, #tpu.memory_space<vmem>>, %arg7: memref<96x128xf32, #tpu.memory_space<vmem>>, %arg8: memref<1x128xf32, #tpu.memory_space<vmem>>, %arg9: memref<32x32xf32, #tpu.memory_space<vmem>>, %arg10: memref<1x32xf32, #tpu.memory_space<vmem>>, %arg11: memref<1x96xf32, #tpu.memory_space<vmem>>, %arg12: memref<1x8xf32, #tpu.memory_space<vmem>>, %arg13: memref<1x96xf32, #tpu.memory_space<vmem>>) attributes {dimension_semantics = [#tpu.dimension_semantics<arbitrary>], iteration_bounds = array<i64: 1>, scalar_prefetch = 0 : i64, scratch_operands = 1 : i64, tpu.core_type = #tpu.core_type<tc>, window_params = [{pipeline_mode = #tpu.pipeline_mode<synchronous>, transform_indices = @transform_0, window_bounds = array<i64: 1, 32>}, {pipeline_mode = #tpu.pipeline_mode<synchronous>, transform_indices = @transform_1, window_bounds = array<i64: 1, 32>}, {pipeline_mode = #tpu.pipeline_mode<synchronous>, transform_indices = @transform_2, window_bounds = array<i64: 8, 32>}, {pipeline_mode = #tpu.pipeline_mode<synchronous>, transform_indices = @transform_3, window_bounds = array<i64: 32, 8>}, {pipeline_mode = #tpu.pipeline_mode<synchronous>, transform_indices = @transform_4, window_bounds = array<i64: 1, 32>}, {pipeline_mode = #tpu.pipeline_mode<synchronous>, transform_indices = @transform_5, window_bounds = array<i64: 1, 32>}, {pipeline_mode = #tpu.pipeline_mode<synchronous>, transform_indices = @transform_6, window_bounds = array<i64: 96, 128>}, {pipeline_mode = #tpu.pipeline_mode<synchronous>, transform_indices = @transform_7, window_bounds = array<i64: 1, 128>}, {pipeline_mode = #tpu.pipeline_mode<synchronous>, transform_indices = @transform_8, window_bounds = array<i64: 32, 32>}, {pipeline_mode = #tpu.pipeline_mode<synchronous>, transform_indices = @transform_9, window_bounds = array<i64: 1, 32>}, {pipeline_mode = #tpu.pipeline_mode<synchronous>, transform_indices = @transform_10, window_bounds = array<i64: 1, 96>}, {pipeline_mode = #tpu.pipeline_mode<synchronous>, transform_indices = @transform_11, window_bounds = array<i64: 1, 8>}]} {
    %c0 = arith.constant 0 : index
    %c0_0 = arith.constant 0 : index
    %0 = vector.load %arg1[%c0, %c0_0] : memref<1x32xf32, #tpu.memory_space<vmem>>, vector<1x32xf32>
    %c0_1 = arith.constant 0 : index
    %c0_2 = arith.constant 0 : index
    %1 = vector.load %arg2[%c0_1, %c0_2] : memref<1x32xf32, #tpu.memory_space<vmem>>, vector<1x32xf32>
    %c0_3 = arith.constant 0 : index
    %c0_4 = arith.constant 0 : index
    %2 = vector.load %arg5[%c0_3, %c0_4] : memref<1x32xf32, #tpu.memory_space<vmem>>, vector<1x32xf32>
    %c0_5 = arith.constant 0 : index
    %c0_6 = arith.constant 0 : index
    %3 = vector.load %arg6[%c0_5, %c0_6] : memref<1x32xf32, #tpu.memory_space<vmem>>, vector<1x32xf32>
    %c0_7 = arith.constant 0 : index
    %c0_8 = arith.constant 0 : index
    %4 = vector.load %arg4[%c0_7, %c0_8] : memref<32x8xf32, #tpu.memory_space<vmem>>, vector<32x8xf32>
    %cst = arith.constant dense<0.000000e+00> : vector<1x8xf32>
    %5 = tpu.matmul %3, %4, %cst {dimension_numbers = #tpu.dot_dimension_numbers<[1], [0], [0], [1], [0, 0, 1, 1], [], []>} : vector<1x32xf32>, vector<32x8xf32>, vector<1x8xf32> -> vector<1x8xf32>
    %cst_9 = arith.constant dense<0xFF800000> : vector<1xf32>
    %6 = vector.multi_reduction <maximumf>, %5, %cst_9 [1] : vector<1x8xf32> to vector<1xf32>
    %7 = vector.shape_cast %6 : vector<1xf32> to vector<1x1xf32>
    %8 = vector.broadcast %7 : vector<1x1xf32> to vector<1x8xf32>
    %9 = arith.subf %5, %8 : vector<1x8xf32>
    %10 = math.exp %9 : vector<1x8xf32>
    %cst_10 = arith.constant dense<0.000000e+00> : vector<1xf32>
    %11 = vector.multi_reduction <add>, %10, %cst_10 [1] : vector<1x8xf32> to vector<1xf32>
    %12 = vector.shape_cast %11 : vector<1xf32> to vector<1x1xf32>
    %13 = vector.broadcast %12 : vector<1x1xf32> to vector<1x8xf32>
    %14 = arith.divf %10, %13 : vector<1x8xf32>
    %c0_11 = arith.constant 0 : index
    %c0_12 = arith.constant 0 : index
    %15 = vector.load %arg12[%c0_11, %c0_12] : memref<1x8xf32, #tpu.memory_space<vmem>>, vector<1x8xf32>
    tpu.vector_store %arg12[%c0_11, %c0_12], %14 {strides = array<i32>} : memref<1x8xf32, #tpu.memory_space<vmem>>, vector<1x8xf32>,
    %c0_13 = arith.constant 0 : index
    %c0_14 = arith.constant 0 : index
    %16 = vector.load %arg3[%c0_13, %c0_14] : memref<8x32xf32, #tpu.memory_space<vmem>>, vector<8x32xf32>
    %cst_15 = arith.constant dense<0.000000e+00> : vector<1x32xf32>
    %17 = tpu.matmul %14, %16, %cst_15 {dimension_numbers = #tpu.dot_dimension_numbers<[1], [0], [0], [1], [0, 0, 1, 1], [], []>} : vector<1x8xf32>, vector<8x32xf32>, vector<1x32xf32> -> vector<1x32xf32>
    %c0_16 = arith.constant 0 : index
    %c0_17 = arith.constant 0 : index
    %18 = vector.load %arg13[%c0_16, %c0_17] : memref<1x96xf32, #tpu.memory_space<vmem>>, vector<1x32xf32>
    tpu.vector_store %arg13[%c0_16, %c0_17], %17 {strides = array<i32>} : memref<1x96xf32, #tpu.memory_space<vmem>>, vector<1x32xf32>,
    %c0_18 = arith.constant 0 : index
    %c32 = arith.constant 32 : index
    %19 = vector.load %arg13[%c0_18, %c32] : memref<1x96xf32, #tpu.memory_space<vmem>>, vector<1x32xf32>
    tpu.vector_store %arg13[%c0_18, %c32], %2 {strides = array<i32>} : memref<1x96xf32, #tpu.memory_space<vmem>>, vector<1x32xf32>,
    %c0_19 = arith.constant 0 : index
    %c64 = arith.constant 64 : index
    %20 = vector.load %arg13[%c0_19, %c64] : memref<1x96xf32, #tpu.memory_space<vmem>>, vector<1x32xf32>
    tpu.vector_store %arg13[%c0_19, %c64], %0 {strides = array<i32>} : memref<1x96xf32, #tpu.memory_space<vmem>>, vector<1x32xf32>,
    %c0_20 = arith.constant 0 : index
    %c0_21 = arith.constant 0 : index
    %21 = vector.load %arg13[%c0_20, %c0_21] : memref<1x96xf32, #tpu.memory_space<vmem>>, vector<1x96xf32>
    %c0_22 = arith.constant 0 : index
    %c0_23 = arith.constant 0 : index
    %22 = vector.load %arg7[%c0_22, %c0_23] : memref<96x128xf32, #tpu.memory_space<vmem>>, vector<96x128xf32>
    %cst_24 = arith.constant dense<0.000000e+00> : vector<1x128xf32>
    %23 = tpu.matmul %21, %22, %cst_24 {dimension_numbers = #tpu.dot_dimension_numbers<[1], [0], [0], [1], [0, 0, 1, 1], [], []>} : vector<1x96xf32>, vector<96x128xf32>, vector<1x128xf32> -> vector<1x128xf32>
    %c0_25 = arith.constant 0 : index
    %c0_26 = arith.constant 0 : index
    %24 = vector.load %arg8[%c0_25, %c0_26] : memref<1x128xf32, #tpu.memory_space<vmem>>, vector<1x128xf32>
    %25 = arith.addf %23, %24 : vector<1x128xf32>
    %26 = arith.negf %25 : vector<1x128xf32>
    %27 = math.exp %26 : vector<1x128xf32>
    %cst_27 = arith.constant 1.000000e+00 : f32
    %28 = vector.broadcast %cst_27 : f32 to vector<1x128xf32>
    %29 = arith.addf %28, %27 : vector<1x128xf32>
    %30 = arith.divf %28, %29 : vector<1x128xf32>
    %31 = math.tanh %25 : vector<1x128xf32>
    %32 = vector.extract_strided_slice %30 {offsets = [0, 0], sizes = [1, 32], strides = [1, 1]} : vector<1x128xf32> to vector<1x32xf32>
    %33 = vector.extract_strided_slice %30 {offsets = [0, 32], sizes = [1, 32], strides = [1, 1]} : vector<1x128xf32> to vector<1x32xf32>
    %34 = vector.extract_strided_slice %31 {offsets = [0, 64], sizes = [1, 32], strides = [1, 1]} : vector<1x128xf32> to vector<1x32xf32>
    %35 = vector.extract_strided_slice %30 {offsets = [0, 96], sizes = [1, 32], strides = [1, 1]} : vector<1x128xf32> to vector<1x32xf32>
    %36 = arith.mulf %33, %1 : vector<1x32xf32>
    %37 = arith.mulf %32, %34 : vector<1x32xf32>
    %38 = arith.addf %36, %37 : vector<1x32xf32>
    %39 = math.tanh %38 : vector<1x32xf32>
    %40 = arith.mulf %35, %39 : vector<1x32xf32>
    %c0_28 = arith.constant 0 : index
    %c0_29 = arith.constant 0 : index
    %41 = vector.load %arg9[%c0_28, %c0_29] : memref<32x32xf32, #tpu.memory_space<vmem>>, vector<32x32xf32>
    %cst_30 = arith.constant dense<0.000000e+00> : vector<1x32xf32>
    %42 = tpu.matmul %40, %41, %cst_30 {dimension_numbers = #tpu.dot_dimension_numbers<[1], [0], [0], [1], [0, 0, 1, 1], [], []>} : vector<1x32xf32>, vector<32x32xf32>, vector<1x32xf32> -> vector<1x32xf32>
    %c0_31 = arith.constant 0 : index
    %c0_32 = arith.constant 0 : index
    %43 = vector.load %arg10[%c0_31, %c0_32] : memref<1x32xf32, #tpu.memory_space<vmem>>, vector<1x32xf32>
    %44 = arith.addf %42, %43 : vector<1x32xf32>
    %c0_33 = arith.constant 0 : index
    %c0_34 = arith.constant 0 : index
    %45 = vector.load %arg11[%c0_33, %c0_34] : memref<1x96xf32, #tpu.memory_space<vmem>>, vector<1x32xf32>
    tpu.vector_store %arg11[%c0_33, %c0_34], %44 {strides = array<i32>} : memref<1x96xf32, #tpu.memory_space<vmem>>, vector<1x32xf32>,
    %c0_35 = arith.constant 0 : index
    %c32_36 = arith.constant 32 : index
    %46 = vector.load %arg11[%c0_35, %c32_36] : memref<1x96xf32, #tpu.memory_space<vmem>>, vector<1x32xf32>
    tpu.vector_store %arg11[%c0_35, %c32_36], %40 {strides = array<i32>} : memref<1x96xf32, #tpu.memory_space<vmem>>, vector<1x32xf32>,
    %c0_37 = arith.constant 0 : index
    %c64_38 = arith.constant 64 : index
    %47 = vector.load %arg11[%c0_37, %c64_38] : memref<1x96xf32, #tpu.memory_space<vmem>>, vector<1x32xf32>
    tpu.vector_store %arg11[%c0_37, %c64_38], %38 {strides = array<i32>} : memref<1x96xf32, #tpu.memory_space<vmem>>, vector<1x32xf32>,
    return
  }
  func.func @transform_0(%arg0: i32) -> (i32, i32) {
    %c0_i32 = arith.constant 0 : i32
    %c0_i32_0 = arith.constant 0 : i32
    %c0_i32_1 = arith.constant 0 : i32
    return %c0_i32, %c0_i32_0 : i32, i32
  }
  func.func @transform_1(%arg0: i32) -> (i32, i32) {
    %c0_i32 = arith.constant 0 : i32
    %c0_i32_0 = arith.constant 0 : i32
    %c0_i32_1 = arith.constant 0 : i32
    return %c0_i32, %c0_i32_0 : i32, i32
  }
  func.func @transform_2(%arg0: i32) -> (i32, i32) {
    %c0_i32 = arith.constant 0 : i32
    %c0_i32_0 = arith.constant 0 : i32
    %c0_i32_1 = arith.constant 0 : i32
    return %c0_i32, %c0_i32_0 : i32, i32
  }
  func.func @transform_3(%arg0: i32) -> (i32, i32) {
    %c0_i32 = arith.constant 0 : i32
    %c0_i32_0 = arith.constant 0 : i32
    %c0_i32_1 = arith.constant 0 : i32
    return %c0_i32, %c0_i32_0 : i32, i32
  }
  func.func @transform_4(%arg0: i32) -> (i32, i32) {
    %c0_i32 = arith.constant 0 : i32
    %c0_i32_0 = arith.constant 0 : i32
    %c0_i32_1 = arith.constant 0 : i32
    return %c0_i32, %c0_i32_0 : i32, i32
  }
  func.func @transform_5(%arg0: i32) -> (i32, i32) {
    %c0_i32 = arith.constant 0 : i32
    %c0_i32_0 = arith.constant 0 : i32
    %c0_i32_1 = arith.constant 0 : i32
    return %c0_i32, %c0_i32_0 : i32, i32
  }
  func.func @transform_6(%arg0: i32) -> (i32, i32) {
    %c0_i32 = arith.constant 0 : i32
    %c0_i32_0 = arith.constant 0 : i32
    %c0_i32_1 = arith.constant 0 : i32
    return %c0_i32, %c0_i32_0 : i32, i32
  }
  func.func @transform_7(%arg0: i32) -> (i32, i32) {
    %c0_i32 = arith.constant 0 : i32
    %c0_i32_0 = arith.constant 0 : i32
    %c0_i32_1 = arith.constant 0 : i32
    return %c0_i32, %c0_i32_0 : i32, i32
  }
  func.func @transform_8(%arg0: i32) -> (i32, i32) {
    %c0_i32 = arith.constant 0 : i32
    %c0_i32_0 = arith.constant 0 : i32
    %c0_i32_1 = arith.constant 0 : i32
    return %c0_i32, %c0_i32_0 : i32, i32
  }
  func.func @transform_9(%arg0: i32) -> (i32, i32) {
    %c0_i32 = arith.constant 0 : i32
    %c0_i32_0 = arith.constant 0 : i32
    %c0_i32_1 = arith.constant 0 : i32
    return %c0_i32, %c0_i32_0 : i32, i32
  }
  func.func @transform_10(%arg0: i32) -> (i32, i32) {
    %c0_i32 = arith.constant 0 : i32
    %c0_i32_0 = arith.constant 0 : i32
    %c0_i32_1 = arith.constant 0 : i32
    return %c0_i32, %c0_i32_0 : i32, i32
  }
  func.func @transform_11(%arg0: i32) -> (i32, i32) {
    %c0_i32 = arith.constant 0 : i32
    %c0_i32_0 = arith.constant 0 : i32
    %c0_i32_1 = arith.constant 0 : i32
    return %c0_i32, %c0_i32_0 : i32, i32
  }
}

</mosaic_0001>

<llo_original>
// kernel: tpu_custom_call.1
$region0: #{tpu_custom_call.1}
  #allocation0 [shape = 'u32[]', space=smem, size = 0x4, offset = 0x4, fixed_abs, tag = 'smem constant byte address 0x4 - core index']
  #allocation1 [shape = 'u32[144,128]{1,0:T(1,128)}', space=vmem, size = 0x12000, scoped, tag = 'internal scratch']
  #allocation2 [shape = 'f32[1,96]{1,0:T(1,128)}', space=vmem, size = 0x200, scoped, tag = 'scratch operand']
  %s0 = inlined_call_operand.vmem [shape: f32[1,32], index: 0, kind: input, shape index: {}]
  %s1 = inlined_call_operand.vmem [shape: f32[1,32], index: 1, kind: input, shape index: {}]
  %s2 = inlined_call_operand.vmem [shape: f32[8,32], index: 2, kind: input, shape index: {}]
  %s3 = inlined_call_operand.vmem [shape: f32[32,8], index: 3, kind: input, shape index: {}]
  %s4 = inlined_call_operand.vmem [shape: f32[1,32], index: 4, kind: input, shape index: {}]
  %s5 = inlined_call_operand.vmem [shape: f32[1,32], index: 5, kind: input, shape index: {}]
  %s6 = inlined_call_operand.hbm [shape: f32[96,128], index: 6, kind: input, shape index: {}]
  %s7 = inlined_call_operand.vmem [shape: f32[1,128], index: 7, kind: input, shape index: {}]
  %s8 = inlined_call_operand.vmem [shape: f32[32,32], index: 8, kind: input, shape index: {}]
  %s9 = inlined_call_operand.vmem [shape: f32[1,32], index: 9, kind: input, shape index: {}]
  %s10 = inlined_call_operand.hbm [shape: f32[1,96], index: 10, kind: output, shape index: {0}]
  %s11 = inlined_call_operand.hbm [shape: f32[1,8], index: 11, kind: output, shape index: {1}]
  %12 = xla_tuple %s10, %s11
  %s13 = sld [smem:[#allocation0]]
  $region62: #{tpu_custom_call.1} parent=0
    _
  %s15 = ssub.s32 1, %s13
  %s16 = scalar_select 0, %s15, %s13
  $region1: #{tpu_custom_call.1} parent=0
    #allocation3 [shape = 'u8[49152]{0}', space=vmem, size = 0xc000, scoped, tag = 'input window, operand 6, single buffered']
    #allocation4 [shape = 's32[1]{0}', space=sflag, size = 0x4, scoped, tag = 'scoped memory for tpu_custom_call.1']
    #allocation5 [shape = 's32[1]{0}', space=sflag, size = 0x4, scoped, tag = 'scoped memory for tpu_custom_call.1']
    #allocation6 [shape = 'u8[512]{0}', space=vmem, size = 0x400, scoped, tag = 'output window, operand 0, single buffered']
    #allocation7 [shape = 'u8[512]{0}', space=vmem, size = 0x400, scoped, tag = 'output window, operand 1, single buffered']
    #allocation8 [shape = 's32[1]{0}', space=sflag, size = 0x4, scoped, tag = 'scoped memory for tpu_custom_call.1']
    %17 = vsyncpa [#allocation4], 0
    %18 = vsyncpa [#allocation5], 0
    %19 = vsyncpa [#allocation8], 0
    // Predicated region
    $region2: #{tpu_custom_call.1} parent=1 // pred_check
      _
    $region3: #{tpu_custom_call.1} parent=1 // pred_check_branch
      %21 = sbr.rel (0) target = $region5
    $region4: #{tpu_custom_call.1} parent=1 // pred_region
      _
    $region5: #{tpu_custom_call.1} parent=1 // pred_fallthru
      _
    // Predicated region
    $region6: #{tpu_custom_call.1} parent=1 // pred_check
      _
    $region7: #{tpu_custom_call.1} parent=1 // pred_check_branch
      %23 = sbr.rel (0) target = $region9
    $region8: #{tpu_custom_call.1} parent=1 // pred_region
      _
    $region9: #{tpu_custom_call.1} parent=1 // pred_fallthru
      _
    // Predicated region
    $region10: #{tpu_custom_call.1} parent=1 // pred_check
      _
    $region11: #{tpu_custom_call.1} parent=1 // pred_check_branch
      %25 = sbr.rel (0) target = $region13
    $region12: #{tpu_custom_call.1} parent=1 // pred_region
      _
    $region13: #{tpu_custom_call.1} parent=1 // pred_fallthru
      _
    // Predicated region
    $region14: #{tpu_custom_call.1} parent=1 // pred_check
      _
    $region15: #{tpu_custom_call.1} parent=1 // pred_check_branch
      %27 = sbr.rel (0) target = $region17
    $region16: #{tpu_custom_call.1} parent=1 // pred_region
      _
    $region17: #{tpu_custom_call.1} parent=1 // pred_fallthru
      _
    // Predicated region
    $region18: #{tpu_custom_call.1} parent=1 // pred_check
      _
    $region19: #{tpu_custom_call.1} parent=1 // pred_check_branch
      %29 = sbr.rel (0) target = $region21
    $region20: #{tpu_custom_call.1} parent=1 // pred_region
      _
    $region21: #{tpu_custom_call.1} parent=1 // pred_fallthru
      _
    // Predicated region
    $region22: #{tpu_custom_call.1} parent=1 // pred_check
      _
    $region23: #{tpu_custom_call.1} parent=1 // pred_check_branch
      %31 = sbr.rel (0) target = $region25
    $region24: #{tpu_custom_call.1} parent=1 // pred_region
      _
    $region25: #{tpu_custom_call.1} parent=1 // pred_fallthru
      _
    // Predicated region
    $region26: #{tpu_custom_call.1} parent=1 // pred_check
      _
    $region27: #{tpu_custom_call.1} parent=1 // pred_check_branch
      %33 = sbr.rel (0) target = $region29
    $region28: #{tpu_custom_call.1} parent=1 // pred_region
      %s35 = ssub.s32 1536, 1536
      %36 = vsyncadd [#allocation4], %s35
      %s37 = sshll.u32 [#allocation3], 4
      %s38 = int_to_ptr.vmem [resolvable:$true] %s37
      %43 = dma.hbm_to_vmem [thread:$0]  %s6, 1536, %s38, [#allocation4], 128, 128, 8
    $region29: #{tpu_custom_call.1} parent=1 // pred_fallthru
      _
    // Predicated region
    $region30: #{tpu_custom_call.1} parent=1 // pred_check
      _
    $region31: #{tpu_custom_call.1} parent=1 // pred_check_branch
      %45 = sbr.rel (0) target = $region33
    $region32: #{tpu_custom_call.1} parent=1 // pred_region
      _
    $region33: #{tpu_custom_call.1} parent=1 // pred_fallthru
      _
    // Predicated region
    $region34: #{tpu_custom_call.1} parent=1 // pred_check
      _
    $region35: #{tpu_custom_call.1} parent=1 // pred_check_branch
      %47 = sbr.rel (0) target = $region37
    $region36: #{tpu_custom_call.1} parent=1 // pred_region
      _
    $region37: #{tpu_custom_call.1} parent=1 // pred_fallthru
      _
    // Predicated region
    $region38: #{tpu_custom_call.1} parent=1 // pred_check
      _
    $region39: #{tpu_custom_call.1} parent=1 // pred_check_branch
      %49 = sbr.rel (0) target = $region41
    $region40: #{tpu_custom_call.1} parent=1 // pred_region
      _
    $region41: #{tpu_custom_call.1} parent=1 // pred_fallthru
      _
    // Predicated region
    $region42: #{tpu_custom_call.1} parent=1 // pred_check
      _
    $region43: #{tpu_custom_call.1} parent=1 // pred_check_branch
      %51 = sbr.rel (0) target = $region45
    $region44: #{tpu_custom_call.1} parent=1 // pred_region
      %52 = dma.done [#allocation4], 1536
    $region45: #{tpu_custom_call.1} parent=1 // pred_fallthru
      _
    %v53 = vld [vmem:[%s0] sm:$0x1]
    %v54 = vld [vmem:[%s1] sm:$0x1]
    %v55 = vld [vmem:[%s4] sm:$0x1]
    %v56 = vld [vmem:[%s5] sm:$0x1]
    %v57 = vld [vmem:[%s3] sm:$0xff]
    %v58 = vld [vmem:[%s3 + $0x8] sm:$0xff]
    %v59 = vld [vmem:[%s3 + $0x10] sm:$0xff]
    %v60 = vld [vmem:[%s3 + $0x18] sm:$0xff]
    %vm61 = vcmask 261120
    %v63 = vsel %vm61, %v56, 0
    %65 = vmatprep.subr.mxu0 0.0
    %66 = vmatpush1.msra.mxu0 %v57
    %67 = vmatprep.subr.mxu0 0.0
    %68 = vmatpush1.msra.mxu0 %v58
    %69 = vmatprep.subr.mxu0 0.0
    %70 = vmatpush1.msra.mxu0 %v59
    %71 = vmatprep.subr.mxu0 0.0
    %72 = vmatpush1.msra.mxu0 %v60
    %73 = vmatprep.subr.mxu0 0.0
    %74 = vmatpush1.msra.mxu0 0.0
    %75 = vmatprep.subr.mxu0 0.0
    %76 = vmatpush1.msra.mxu0 0.0
    %77 = vmatprep.subr.mxu0 0.0
    %78 = vmatpush1.msra.mxu0 0.0
    %79 = vmatprep.subr.mxu0 0.0
    %80 = vmatpush1.msra.mxu0 0.0
    %81 = vmatprep.subr.mxu0 0.0
    %82 = vmatpush1.msra.mxu0 0.0
    %83 = vmatprep.subr.mxu0 0.0
    %84 = vmatpush1.msra.mxu0 0.0
    %85 = vmatprep.subr.mxu0 0.0
    %86 = vmatpush1.msra.mxu0 0.0
    %87 = vmatprep.subr.mxu0 0.0
    %88 = vmatpush1.msra.mxu0 0.0
    %89 = vmatprep.subr.mxu0 0.0
    %90 = vmatpush1.msra.mxu0 0.0
    %91 = vmatprep.subr.mxu0 0.0
    %92 = vmatpush1.msra.mxu0 0.0
    %93 = vmatprep.subr.mxu0 0.0
    %94 = vmatpush1.msra.mxu0 0.0
    %95 = vmatprep.subr.mxu0 0.0
    %96 = vmatpush1.msra.mxu0 0.0
    %97 = vmatprep.subr.mxu0 0.0
    %98 = vmatpush1.msra.mxu0 0.0
    %99 = vmatprep.subr.mxu0 0.0
    %100 = vmatpush1.msra.mxu0 0.0
    %101 = vmatprep.subr.mxu0 0.0
    %102 = vmatpush1.msra.mxu0 0.0
    %103 = vmatprep.subr.mxu0 0.0
    %104 = vmatpush1.msra.mxu0 0.0
    %105 = vmatprep.subr.mxu0 0.0
    %106 = vmatpush1.msra.mxu0 0.0
    %107 = vmatprep.subr.mxu0 0.0
    %108 = vmatpush1.msra.mxu0 0.0
    %109 = vmatprep.subr.mxu0 0.0
    %110 = vmatpush1.msra.mxu0 0.0
    %111 = vmatprep.subr.mxu0 0.0
    %112 = vmatpush1.msra.mxu0 0.0
    %113 = vmatprep.subr.mxu0 0.0
    %114 = vmatpush1.msra.mxu0 0.0
    %115 = vmatprep.subr.mxu0 0.0
    %116 = vmatpush1.msra.mxu0 0.0
    %117 = vmatprep.subr.mxu0 0.0
    %118 = vmatpush1.msra.mxu0 0.0
    %119 = vmatprep.subr.mxu0 0.0
    %120 = vmatpush1.msra.mxu0 0.0
    %121 = vmatprep.subr.mxu0 0.0
    %122 = vmatpush1.msra.mxu0 0.0
    %123 = vmatprep.subr.mxu0 0.0
    %124 = vmatpush1.msra.mxu0 0.0
    %125 = vmatprep.subr.mxu0 0.0
    %126 = vmatpush1.msra.mxu0 0.0
    %127 = vmatprep.subr.mxu0 0.0
    %128 = vmatpush1.msra.mxu0 0.0
    %129 = vmatprep.mubr.f32.mxu0 0.0
    %130 = vmatmul.mubr.f32.gmra.mrb[0].mxu0 %v63
    %v131 = vpop.f32.mrb[0].mxu0
    %v132 = vadd.f32 0.0, %v131
    %v133 = vpop.f32.mrb[0].mxu0
    %134 = vdwg.mxu0
    %vm135 = vcmask 57344
    %v136 = vsel %vm135, %v132, -inf
    %137 = vmax.xlane.f32.xlu0 %v136
    %v138 = vpop.xlane.xlu0 %137
    %v139 = vsub.f32 %v132, %v138
    %v140 = vmul.f32 %v139, 1.442695
    %v141 = vpow.pop %v140
    %v142 = vsel %vm135, %v141, 0.0
    %143 = vadd.xlane.f32.xlu0 %v142
    %v144 = vpop.xlane.xlu0 %143
    %v145 = vrcp.pop %v144
    %v146 = vmul.f32 %v141, %v145
    %147 = vst.msk [vmem:[#allocation7] sm:$0x1] %vm135, %v146
    %v148 = vld [vmem:[%s2] sm:$0xff]
    %vm149 = vcmask 64512
    %v151 = vsel %vm149, %v146, 0
    %153 = vmatprep.subr.mxu0 0.0
    %154 = vmatpush1.msra.mxu0 %v148
    %155 = vmatprep.subr.mxu0 0.0
    %156 = vmatpush1.msra.mxu0 0.0
    %157 = vmatprep.subr.mxu0 0.0
    %158 = vmatpush1.msra.mxu0 0.0
    %159 = vmatprep.subr.mxu0 0.0
    %160 = vmatpush1.msra.mxu0 0.0
    %161 = vmatprep.subr.mxu0 0.0
    %162 = vmatpush1.msra.mxu0 0.0
    %163 = vmatprep.subr.mxu0 0.0
    %164 = vmatpush1.msra.mxu0 0.0
    %165 = vmatprep.subr.mxu0 0.0
    %166 = vmatpush1.msra.mxu0 0.0
    %167 = vmatprep.subr.mxu0 0.0
    %168 = vmatpush1.msra.mxu0 0.0
    %169 = vmatprep.subr.mxu0 0.0
    %170 = vmatpush1.msra.mxu0 0.0
    %171 = vmatprep.subr.mxu0 0.0
    %172 = vmatpush1.msra.mxu0 0.0
    %173 = vmatprep.subr.mxu0 0.0
    %174 = vmatpush1.msra.mxu0 0.0
    %175 = vmatprep.subr.mxu0 0.0
    %176 = vmatpush1.msra.mxu0 0.0
    %177 = vmatprep.subr.mxu0 0.0
    %178 = vmatpush1.msra.mxu0 0.0
    %179 = vmatprep.subr.mxu0 0.0
    %180 = vmatpush1.msra.mxu0 0.0
    %181 = vmatprep.subr.mxu0 0.0
    %182 = vmatpush1.msra.mxu0 0.0
    %183 = vmatprep.subr.mxu0 0.0
    %184 = vmatpush1.msra.mxu0 0.0
    %185 = vmatprep.subr.mxu0 0.0
    %186 = vmatpush1.msra.mxu0 0.0
    %187 = vmatprep.subr.mxu0 0.0
    %188 = vmatpush1.msra.mxu0 0.0
    %189 = vmatprep.subr.mxu0 0.0
    %190 = vmatpush1.msra.mxu0 0.0
    %191 = vmatprep.subr.mxu0 0.0
    %192 = vmatpush1.msra.mxu0 0.0
    %193 = vmatprep.subr.mxu0 0.0
    %194 = vmatpush1.msra.mxu0 0.0
    %195 = vmatprep.subr.mxu0 0.0
    %196 = vmatpush1.msra.mxu0 0.0
    %197 = vmatprep.subr.mxu0 0.0
    %198 = vmatpush1.msra.mxu0 0.0
    %199 = vmatprep.subr.mxu0 0.0
    %200 = vmatpush1.msra.mxu0 0.0
    %201 = vmatprep.subr.mxu0 0.0
    %202 = vmatpush1.msra.mxu0 0.0
    %203 = vmatprep.subr.mxu0 0.0
    %204 = vmatpush1.msra.mxu0 0.0
    %205 = vmatprep.subr.mxu0 0.0
    %206 = vmatpush1.msra.mxu0 0.0
    %207 = vmatprep.subr.mxu0 0.0
    %208 = vmatpush1.msra.mxu0 0.0
    %209 = vmatprep.subr.mxu0 0.0
    %210 = vmatpush1.msra.mxu0 0.0
    %211 = vmatprep.subr.mxu0 0.0
    %212 = vmatpush1.msra.mxu0 0.0
    %213 = vmatprep.subr.mxu0 0.0
    %214 = vmatpush1.msra.mxu0 0.0
    %215 = vmatprep.subr.mxu0 0.0
    %216 = vmatpush1.msra.mxu0 0.0
    %217 = vmatprep.mubr.f32.mxu0 0.0
    %218 = vmatmul.mubr.f32.gmra.mrb[0].mxu0 %v151
    %v219 = vpop.f32.mrb[0].mxu0
    %v220 = vadd.f32 0.0, %v219
    %v221 = vpop.f32.mrb[0].mxu0
    %222 = vdwg.mxu0
    %vm223 = vcmask 253952
    %224 = vst.msk [vmem:[#allocation2] sm:$0x1] %vm223, %v220
    %v226 = vlaneseq
    %v227 = vshrl.u32 %v226, 7
    %v228 = vsub.s32 0, %v227
    %v229 = vrot.slane %v55, %v228
    %230 = vrot.lane.b32.xlu0 %v229, 32
    %v231 = vpop.permute.xlu0 %230
    %vm233 = vcmask 516352
    %234 = vst.msk [vmem:[#allocation2] sm:$0x1] %vm233, %v231
    %v236 = vlaneseq
    %v237 = vshrl.u32 %v236, 7
    %v238 = vsub.s32 0, %v237
    %v239 = vrot.slane %v53, %v238
    %240 = vrot.lane.b32.xlu0 %v239, 64
    %v241 = vpop.permute.xlu0 %240
    %vm243 = vcmask 778752
    %244 = vst.msk [vmem:[#allocation2] sm:$0x1] %vm243, %v241
    %v245 = vld [vmem:[#allocation2] sm:$0x1]
    %v246 = vld [vmem:[#allocation3] sm:$0xff]
    %v247 = vld [vmem:[#allocation3 + $0x8] sm:$0xff]
    %v248 = vld [vmem:[#allocation3 + $0x10] sm:$0xff]
    %v249 = vld [vmem:[#allocation3 + $0x18] sm:$0xff]
    %v250 = vld [vmem:[#allocation3 + $0x20] sm:$0xff]
    %v251 = vld [vmem:[#allocation3 + $0x28] sm:$0xff]
    %v252 = vld [vmem:[#allocation3 + $0x30] sm:$0xff]
    %v253 = vld [vmem:[#allocation3 + $0x38] sm:$0xff]
    %v254 = vld [vmem:[#allocation3 + $0x40] sm:$0xff]
    %v255 = vld [vmem:[#allocation3 + $0x48] sm:$0xff]
    %v256 = vld [vmem:[#allocation3 + $0x50] sm:$0xff]
    %v257 = vld [vmem:[#allocation3 + $0x58] sm:$0xff]
    %v258 = vld [vmem:[%s7] sm:$0x1]
    %vm259 = vcmask 785408
    %v261 = vsel %vm259, %v245, 0
    %263 = vmatprep.subr.mxu0 0.0
    %264 = vmatpush1.msra.mxu0 %v246
    %265 = vmatprep.subr.mxu0 0.0
    %266 = vmatpush1.msra.mxu0 %v247
    %267 = vmatprep.subr.mxu0 0.0
    %268 = vmatpush1.msra.mxu0 %v248
    %269 = vmatprep.subr.mxu0 0.0
    %270 = vmatpush1.msra.mxu0 %v249
    %271 = vmatprep.subr.mxu0 0.0
    %272 = vmatpush1.msra.mxu0 %v250
    %273 = vmatprep.subr.mxu0 0.0
    %274 = vmatpush1.msra.mxu0 %v251
    %275 = vmatprep.subr.mxu0 0.0
    %276 = vmatpush1.msra.mxu0 %v252
    %277 = vmatprep.subr.mxu0 0.0
    %278 = vmatpush1.msra.mxu0 %v253
    %279 = vmatprep.subr.mxu0 0.0
    %280 = vmatpush1.msra.mxu0 %v254
    %281 = vmatprep.subr.mxu0 0.0
    %282 = vmatpush1.msra.mxu0 %v255
    %283 = vmatprep.subr.mxu0 0.0
    %284 = vmatpush1.msra.mxu0 %v256
    %285 = vmatprep.subr.mxu0 0.0
    %286 = vmatpush1.msra.mxu0 %v257
    %287 = vmatprep.subr.mxu0 0.0
    %288 = vmatpush1.msra.mxu0 0.0
    %289 = vmatprep.subr.mxu0 0.0
    %290 = vmatpush1.msra.mxu0 0.0
    %291 = vmatprep.subr.mxu0 0.0
    %292 = vmatpush1.msra.mxu0 0.0
    %293 = vmatprep.subr.mxu0 0.0
    %294 = vmatpush1.msra.mxu0 0.0
    %295 = vmatprep.subr.mxu0 0.0
    %296 = vmatpush1.msra.mxu0 0.0
    %297 = vmatprep.subr.mxu0 0.0
    %298 = vmatpush1.msra.mxu0 0.0
    %299 = vmatprep.subr.mxu0 0.0
    %300 = vmatpush1.msra.mxu0 0.0
    %301 = vmatprep.subr.mxu0 0.0
    %302 = vmatpush1.msra.mxu0 0.0
    %303 = vmatprep.subr.mxu0 0.0
    %304 = vmatpush1.msra.mxu0 0.0
    %305 = vmatprep.subr.mxu0 0.0
    %306 = vmatpush1.msra.mxu0 0.0
    %307 = vmatprep.subr.mxu0 0.0
    %308 = vmatpush1.msra.mxu0 0.0
    %309 = vmatprep.subr.mxu0 0.0
    %310 = vmatpush1.msra.mxu0 0.0
    %311 = vmatprep.subr.mxu0 0.0
    %312 = vmatpush1.msra.mxu0 0.0
    %313 = vmatprep.subr.mxu0 0.0
    %314 = vmatpush1.msra.mxu0 0.0
    %315 = vmatprep.subr.mxu0 0.0
    %316 = vmatpush1.msra.mxu0 0.0
    %317 = vmatprep.subr.mxu0 0.0
    %318 = vmatpush1.msra.mxu0 0.0
    %319 = vmatprep.subr.mxu0 0.0
    %320 = vmatpush1.msra.mxu0 0.0
    %321 = vmatprep.subr.mxu0 0.0
    %322 = vmatpush1.msra.mxu0 0.0
    %323 = vmatprep.subr.mxu0 0.0
    %324 = vmatpush1.msra.mxu0 0.0
    %325 = vmatprep.subr.mxu0 0.0
    %326 = vmatpush1.msra.mxu0 0.0
    %327 = vmatprep.mubr.f32.mxu0 0.0
    %328 = vmatmul.mubr.f32.gmra.mrb[0].mxu0 %v261
    %v329 = vpop.f32.mrb[0].mxu0
    %v330 = vadd.f32 %v258, %v329
    %v331 = vpop.f32.mrb[0].mxu0
    %332 = vdwg.mxu0
    %v333 = vxor.u32 %v330, 2147483648
    %v334 = vmul.f32 %v333, 1.442695
    %v335 = vpow.pop %v334
    %v336 = vadd.f32 %v335, 1.0
    %v337 = vrcp.pop %v336
    %v338 = vmul.f32 1.0, %v337
    %v339 = vtanh.pop %v330
    %v341 = vlaneseq
    %v342 = vshrl.u32 %v341, 7
    %v343 = vsub.s32 0, %v342
    %v344 = vrot.slane %v54, %v343
    %345 = vrot.lane.b32.xlu0 %v344, 32
    %v346 = vpop.permute.xlu0 %345
    %v348 = vmul.f32 %v338, %v346
    %350 = vrot.lane.b32.xlu0 %v339, 64
    %v351 = vpop.permute.xlu0 %350
    %v353 = vmul.f32 %v338, %v351
    %355 = vrot.lane.b32.xlu0 %v353, 32
    %v356 = vpop.permute.xlu0 %355
    %v358 = vadd.f32 %v348, %v356
    %v359 = vtanh.pop %v358
    %361 = vrot.lane.b32.xlu0 %v359, 64
    %v362 = vpop.permute.xlu0 %361
    %v364 = vmul.f32 %v338, %v362
    %v365 = vld [vmem:[%s8] sm:$0xff]
    %v366 = vld [vmem:[%s8 + $0x8] sm:$0xff]
    %v367 = vld [vmem:[%s8 + $0x10] sm:$0xff]
    %v368 = vld [vmem:[%s8 + $0x18] sm:$0xff]
    %v369 = vld [vmem:[%s9] sm:$0x1]
    %371 = vrot.lane.b32.xlu0 %v364, 32
    %v372 = vpop.permute.xlu0 %371
    %v373 = vsel %vm61, %v372, 0
    %375 = vmatprep.subr.mxu0 0.0
    %376 = vmatpush1.msra.mxu0 %v365
    %377 = vmatprep.subr.mxu0 0.0
    %378 = vmatpush1.msra.mxu0 %v366
    %379 = vmatprep.subr.mxu0 0.0
    %380 = vmatpush1.msra.mxu0 %v367
    %381 = vmatprep.subr.mxu0 0.0
    %382 = vmatpush1.msra.mxu0 %v368
    %383 = vmatprep.subr.mxu0 0.0
    %384 = vmatpush1.msra.mxu0 0.0
    %385 = vmatprep.subr.mxu0 0.0
    %386 = vmatpush1.msra.mxu0 0.0
    %387 = vmatprep.subr.mxu0 0.0
    %388 = vmatpush1.msra.mxu0 0.0
    %389 = vmatprep.subr.mxu0 0.0
    %390 = vmatpush1.msra.mxu0 0.0
    %391 = vmatprep.subr.mxu0 0.0
    %392 = vmatpush1.msra.mxu0 0.0
    %393 = vmatprep.subr.mxu0 0.0
    %394 = vmatpush1.msra.mxu0 0.0
    %395 = vmatprep.subr.mxu0 0.0
    %396 = vmatpush1.msra.mxu0 0.0
    %397 = vmatprep.subr.mxu0 0.0
    %398 = vmatpush1.msra.mxu0 0.0
    %399 = vmatprep.subr.mxu0 0.0
    %400 = vmatpush1.msra.mxu0 0.0
    %401 = vmatprep.subr.mxu0 0.0
    %402 = vmatpush1.msra.mxu0 0.0
    %403 = vmatprep.subr.mxu0 0.0
    %404 = vmatpush1.msra.mxu0 0.0
    %405 = vmatprep.subr.mxu0 0.0
    %406 = vmatpush1.msra.mxu0 0.0
    %407 = vmatprep.subr.mxu0 0.0
    %408 = vmatpush1.msra.mxu0 0.0
    %409 = vmatprep.subr.mxu0 0.0
    %410 = vmatpush1.msra.mxu0 0.0
    %411 = vmatprep.subr.mxu0 0.0
    %412 = vmatpush1.msra.mxu0 0.0
    %413 = vmatprep.subr.mxu0 0.0
    %414 = vmatpush1.msra.mxu0 0.0
    %415 = vmatprep.subr.mxu0 0.0
    %416 = vmatpush1.msra.mxu0 0.0
    %417 = vmatprep.subr.mxu0 0.0
    %418 = vmatpush1.msra.mxu0 0.0
    %419 = vmatprep.subr.mxu0 0.0
    %420 = vmatpush1.msra.mxu0 0.0
    %421 = vmatprep.subr.mxu0 0.0
    %422 = vmatpush1.msra.mxu0 0.0
    %423 = vmatprep.subr.mxu0 0.0
    %424 = vmatpush1.msra.mxu0 0.0
    %425 = vmatprep.subr.mxu0 0.0
    %426 = vmatpush1.msra.mxu0 0.0
    %427 = vmatprep.subr.mxu0 0.0
    %428 = vmatpush1.msra.mxu0 0.0
    %429 = vmatprep.subr.mxu0 0.0
    %430 = vmatpush1.msra.mxu0 0.0
    %431 = vmatprep.subr.mxu0 0.0
    %432 = vmatpush1.msra.mxu0 0.0
    %433 = vmatprep.subr.mxu0 0.0
    %434 = vmatpush1.msra.mxu0 0.0
    %435 = vmatprep.subr.mxu0 0.0
    %436 = vmatpush1.msra.mxu0 0.0
    %437 = vmatprep.subr.mxu0 0.0
    %438 = vmatpush1.msra.mxu0 0.0
    %439 = vmatprep.mubr.f32.mxu0 0.0
    %440 = vmatmul.mubr.f32.gmra.mrb[0].mxu0 %v373
    %v441 = vpop.f32.mrb[0].mxu0
    %v442 = vadd.f32 %v369, %v441
    %v443 = vpop.f32.mrb[0].mxu0
    %444 = vdwg.mxu0
    %445 = vst.msk [vmem:[#allocation6] sm:$0x1] %vm223, %v442
    %446 = vrot.lane.b32.xlu0 %v364, 64
    %v447 = vpop.permute.xlu0 %446
    %449 = vst.msk [vmem:[#allocation6] sm:$0x1] %vm233, %v447
    %451 = vrot.lane.b32.xlu0 %v358, 32
    %v452 = vpop.permute.xlu0 %451
    %454 = vst.msk [vmem:[#allocation6] sm:$0x1] %vm243, %v452
    // Predicated region
    $region46: #{tpu_custom_call.1} parent=1 // pred_check
      _
    $region47: #{tpu_custom_call.1} parent=1 // pred_check_branch
      %456 = sbr.rel (0) target = $region49
    $region48: #{tpu_custom_call.1} parent=1 // pred_region
      %s458 = ssub.s32 16, 16
      %459 = vsyncadd [#allocation5], %s458
      %s461 = sshll.u32 [#allocation6], 4
      %s462 = int_to_ptr.vmem [resolvable:$true] %s461
      %464 = dma.vmem_to_hbm [thread:$0]  %s462, 16, %s10, [#allocation5]
    $region49: #{tpu_custom_call.1} parent=1 // pred_fallthru
      _
    // Predicated region
    $region50: #{tpu_custom_call.1} parent=1 // pred_check
      _
    $region51: #{tpu_custom_call.1} parent=1 // pred_check_branch
      %466 = sbr.rel (0) target = $region53
    $region52: #{tpu_custom_call.1} parent=1 // pred_region
      %s468 = ssub.s32 16, 16
      %469 = vsyncadd [#allocation8], %s468
      %s471 = sshll.u32 [#allocation7], 4
      %s472 = int_to_ptr.vmem [resolvable:$true] %s471
      %474 = dma.vmem_to_hbm [thread:$0]  %s472, 16, %s11, [#allocation8]
    $region53: #{tpu_custom_call.1} parent=1 // pred_fallthru
      _
    // Predicated region
    $region54: #{tpu_custom_call.1} parent=1 // pred_check
      _
    $region55: #{tpu_custom_call.1} parent=1 // pred_check_branch
      %476 = sbr.rel (0) target = $region57
    $region56: #{tpu_custom_call.1} parent=1 // pred_region
      %477 = dma.done [#allocation5], 16
    $region57: #{tpu_custom_call.1} parent=1 // pred_fallthru
      _
    // Predicated region
    $region58: #{tpu_custom_call.1} parent=1 // pred_check
      _
    $region59: #{tpu_custom_call.1} parent=1 // pred_check_branch
      %479 = sbr.rel (0) target = $region61
    $region60: #{tpu_custom_call.1} parent=1 // pred_region
      %480 = dma.done [#allocation8], 16
    $region61: #{tpu_custom_call.1} parent=1 // pred_fallthru
      _
    %481 = vsyncpa [#allocation4], 1
    %482 = vsyncpa [#allocation5], 1
    %483 = vsyncpa [#allocation8], 1

</llo_original>
